<compile_context>
chip_gen: v6e
topology: v6e:2x2x1
jax: 0.10.0
libtpu: 0.0.40
codegen_flags: <defaults>
</compile_context>

<pallas_src>
import functools

import jax
import jax.numpy as jnp
from jax import lax
from jax.experimental import pallas as pl
from jax.experimental.pallas import tpu as pltpu

FEATURES = 32
IN_DIM = 2
OUT_DIM = 1

_CHUNK = 512  # lanes per inner compute chunk (h1+h2 ~ 32 vregs, fits in 64)


def _round_up(n, m):
    return ((n + m - 1) // m) * m


def _choose_tile(batch, tm_target):
    """Pick (tm, padded_batch): tm is lane-dense (multiple of 128; multiple of
    _CHUNK once it exceeds _CHUNK); big batches get >= 2 grid tiles so the
    "parallel" batch axis can shard across both v7x TensorCores."""
    bp = _round_up(max(int(batch), 1), 128)
    if bp <= _CHUNK:
        return bp, bp                       # single small tile; chunk == tile
    half = _round_up(-(-bp // 2), _CHUNK)   # ceil(bp/2), chunk-aligned
    tm = max(_CHUNK, min(_round_up(int(tm_target), _CHUNK), half))
    return tm, _round_up(bp, tm)


def _discriminator_kernel(x_ref, w1_ref, b1_ref, w2_ref, b2_ref, w3_ref,
                          b3_ref, o_ref, *, chunk, mxu_dtype):
    # x_ref:  (2, tm)   batch tile, batch on lanes
    # w1_ref: (32, 2)   b1_ref: (32, 1)
    # w2_ref: (32, 32)  b2_ref: (32, 1)
    # w3_ref: (32, 1)   b3_ref: (1, 1) scalar in SMEM
    # o_ref:  (1, tm)
    tm = x_ref.shape[1]
    n_chunks = tm // chunk

    # Hoisted per-tile constants (JAX does not CSE broadcast_in_dim; do not
    # re-slice / re-cast these per chunk).
    w1 = w1_ref[...]
    w1_c0 = w1[:, 0:1]                       # (32, 1)
    w1_c1 = w1[:, 1:2]                       # (32, 1)
    b1 = b1_ref[...]                         # (32, 1)
    b2 = b2_ref[...]                         # (32, 1)
    w3 = w3_ref[...]                         # (32, 1)
    w2_mx = w2_ref[...].astype(mxu_dtype)    # (32, 32), bf16 by default
    b3 = b3_ref[0, 0]                        # scalar (SMEM)

    def body(c, carry):
        off = pl.multiple_of(c * chunk, chunk)
        x = x_ref[:, pl.ds(off, chunk)]                        # (2, chunk)

        # Layer 1: Linear(2, 32) + ReLU as two broadcast FMAs on the VPU
        # (a K=2 matmul would waste the MXU).
        h1 = jnp.maximum(w1_c0 * x[0:1, :] + w1_c1 * x[1:2, :] + b1, 0.0)

        # Layer 2: Linear(32, 32) + ReLU on the MXU (bf16 in, f32 accumulate).
        h2 = jnp.dot(w2_mx, h1.astype(mxu_dtype),
                     preferred_element_type=jnp.float32)
        h2 = jnp.maximum(h2 + b2, 0.0)                         # (32, chunk)

        # Layer 3: Linear(32, 1) + Sigmoid as multiply + sublane reduction
        # (an N=1 matmul would waste the MXU).
        logits = jnp.sum(w3 * h2, axis=0, keepdims=True) + b3  # (1, chunk)
        o_ref[:, pl.ds(off, chunk)] = jax.nn.sigmoid(logits).astype(o_ref.dtype)
        return carry

    lax.fori_loop(0, n_chunks, body, 0)


def _prep_params(params):
    """Canonicalize PyTorch-layout params (w: (out,in), b: (out,)) for the
    lane-major kernel: biases -> (out, 1) columns, w3 -> (32, 1) column,
    b3 -> (1, 1) SMEM scalar."""
    w1, b1, w2, b2, w3, b3 = params
    w1 = jnp.asarray(w1, jnp.float32).reshape(FEATURES, IN_DIM)
    b1 = jnp.asarray(b1, jnp.float32).reshape(FEATURES, 1)
    w2 = jnp.asarray(w2, jnp.float32).reshape(FEATURES, FEATURES)
    b2 = jnp.asarray(b2, jnp.float32).reshape(FEATURES, 1)
    w3 = jnp.asarray(w3, jnp.float32).reshape(OUT_DIM, FEATURES).T  # (32, 1)
    b3 = jnp.asarray(b3, jnp.float32).reshape(1, 1)
    return w1, b1, w2, b2, w3, b3


def discriminator_forward_lanes(xt, params, *, tm_target=16384,
                                mxu_dtype=jnp.bfloat16):
    """Lane-major fast path: xt is (2, B) float32 (batch on lanes); returns
    (1, B) float32.  Prefer this entry point when the producer can keep the
    batch on the lane axis -- it avoids the wrapper-side transpose HBM pass."""
    w1, b1, w2, b2, w3, b3 = _prep_params(params)
    in_dim, B = xt.shape
    assert in_dim == IN_DIM, f"expected (2, B) input, got {xt.shape}"

    tm, Bp = _choose_tile(B, tm_target)
    chunk = min(_CHUNK, tm)

    xt = xt.astype(jnp.float32)
    if Bp != B:
        xt = jnp.pad(xt, ((0, 0), (0, Bp - B)))

    pinned = lambda shape: pl.BlockSpec(shape, lambda i: (0, 0))
    kernel = functools.partial(_discriminator_kernel, chunk=chunk,
                               mxu_dtype=mxu_dtype)

    out = pl.pallas_call(
        kernel,
        out_shape=jax.ShapeDtypeStruct((OUT_DIM, Bp), jnp.float32),
        grid_spec=pltpu.PrefetchScalarGridSpec(
            num_scalar_prefetch=0,
            grid=(Bp // tm,),
            in_specs=[
                pl.BlockSpec((IN_DIM, tm), lambda i: (0, i)),       # x (2, tm)
                pinned(w1.shape),                                   # (32, 2)
                pinned(b1.shape),                                   # (32, 1)
                pinned(w2.shape),                                   # (32, 32)
                pinned(b2.shape),                                   # (32, 1)
                pinned(w3.shape),                                   # (32, 1)
                pl.BlockSpec(memory_space=pltpu.MemorySpace.SMEM),  # b3 (1,1)
            ],
            out_specs=pl.BlockSpec((OUT_DIM, tm), lambda i: (0, i)),
        ),
        compiler_params=pltpu.CompilerParams(
            dimension_semantics=("parallel",)),
    )(xt, w1, b1, w2, b2, w3, b3)

    return out if Bp == B else out[:, :B]


def discriminator_forward(x, params, *, tm_target=16384,
                          mxu_dtype=jnp.bfloat16):
    """PyTorch-style entry point: x (B, 2) -> (B, 1) float32."""
    out = discriminator_forward_lanes(x.T, params, tm_target=tm_target,
                                      mxu_dtype=mxu_dtype)
    return out.T


def init_params(key, features=FEATURES):
    """Deterministic init mimicking torch.nn.Linear (uniform +-1/sqrt(fan_in)),
    stored in PyTorch's native layout: w (out_features, in_features),
    b (out_features,)."""
    ks = jax.random.split(key, 6)

    def linear(kw, kb, fan_in, fan_out):
        bound = 1.0 / jnp.sqrt(fan_in)
        w = jax.random.uniform(kw, (fan_out, fan_in), jnp.float32, -bound, bound)
        b = jax.random.uniform(kb, (fan_out,), jnp.float32, -bound, bound)
        return w, b

    w1, b1 = linear(ks[0], ks[1], IN_DIM, features)
    w2, b2 = linear(ks[2], ks[3], features, features)
    w3, b3 = linear(ks[4], ks[5], features, OUT_DIM)
    return (w1, b1, w2, b2, w3, b3)


def reference_forward(x, params):
    w1, b1, w2, b2, w3, b3 = params
    h1 = jnp.maximum(x @ w1.T + b1, 0.0)
    h2 = jnp.maximum(h1 @ w2.T + b2, 0.0)
    return jax.nn.sigmoid(h2 @ w3.T + b3)


if __name__ == "__main__":
    key = jax.random.PRNGKey(0)
    k_param, k_x = jax.random.split(key)

    params = init_params(k_param, FEATURES)

    B = 16  # small batch of 2-D points, as the GAN discriminator expects
    x = jax.random.normal(k_x, (B, IN_DIM), jnp.float32)

    y_ref = reference_forward(x, params)

    # f32-MXU path: tight check against the pure-JAX reference.
    y_f32 = jax.block_until_ready(
        discriminator_forward(x, params, mxu_dtype=jnp.float32))
    assert y_f32.shape == (B, OUT_DIM)
    assert jnp.allclose(y_f32, y_ref, atol=1e-5, rtol=1e-5), "f32 mismatch"

    # Default bf16-MXU fast path: looser tolerance (bf16 mantissa on layer 2).
    y_bf16 = jax.block_until_ready(discriminator_forward(x, params))
    assert y_bf16.shape == (B, OUT_DIM)
    assert jnp.allclose(y_bf16, y_ref, atol=2e-2, rtol=0.0), "bf16 mismatch"

    print("KERNEL_OK")
</pallas_src>

<mosaic_0001>
module attributes {stable_mosaic.version = 11 : i64} {
  func.func @_discriminator_kernel(%arg0: i32, %arg1: memref<2x128xf32, #tpu.memory_space<vmem>>, %arg2: memref<32x2xf32, #tpu.memory_space<vmem>>, %arg3: memref<32x1xf32, #tpu.memory_space<vmem>>, %arg4: memref<32x32xf32, #tpu.memory_space<vmem>>, %arg5: memref<32x1xf32, #tpu.memory_space<vmem>>, %arg6: memref<32x1xf32, #tpu.memory_space<vmem>>, %arg7: memref<1x1xf32, #tpu.memory_space<smem>>, %arg8: memref<1x128xf32, #tpu.memory_space<vmem>>) attributes {dimension_semantics = [#tpu.dimension_semantics<parallel>], iteration_bounds = array<i64: 1>, scalar_prefetch = 0 : i64, scratch_operands = 0 : i64, tpu.core_type = #tpu.core_type<tc>, window_params = [{transform_indices = @transform_0, window_bounds = array<i64: 2, 128>}, {pipeline_mode = #tpu.pipeline_mode<synchronous>, transform_indices = @transform_1, window_bounds = array<i64: 32, 2>}, {pipeline_mode = #tpu.pipeline_mode<synchronous>, transform_indices = @transform_2, window_bounds = array<i64: 32, 1>}, {pipeline_mode = #tpu.pipeline_mode<synchronous>, transform_indices = @transform_3, window_bounds = array<i64: 32, 32>}, {pipeline_mode = #tpu.pipeline_mode<synchronous>, transform_indices = @transform_4, window_bounds = array<i64: 32, 1>}, {pipeline_mode = #tpu.pipeline_mode<synchronous>, transform_indices = @transform_5, window_bounds = array<i64: 32, 1>}, {transform_indices = @transform_6, window_bounds = array<i64: 1, 1>}, {transform_indices = @transform_7, window_bounds = array<i64: 1, 128>}]} {
    %c0 = arith.constant 0 : index
    %c0_0 = arith.constant 0 : index
    %0 = vector.load %arg2[%c0, %c0_0] : memref<32x2xf32, #tpu.memory_space<vmem>>, vector<32x2xf32>
    %1 = vector.extract_strided_slice %0 {offsets = [0, 0], sizes = [32, 1], strides = [1, 1]} : vector<32x2xf32> to vector<32x1xf32>
    %2 = vector.extract_strided_slice %0 {offsets = [0, 1], sizes = [32, 1], strides = [1, 1]} : vector<32x2xf32> to vector<32x1xf32>
    %c0_1 = arith.constant 0 : index
    %c0_2 = arith.constant 0 : index
    %3 = vector.load %arg3[%c0_1, %c0_2] : memref<32x1xf32, #tpu.memory_space<vmem>>, vector<32x1xf32>
    %c0_3 = arith.constant 0 : index
    %c0_4 = arith.constant 0 : index
    %4 = vector.load %arg5[%c0_3, %c0_4] : memref<32x1xf32, #tpu.memory_space<vmem>>, vector<32x1xf32>
    %c0_5 = arith.constant 0 : index
    %c0_6 = arith.constant 0 : index
    %5 = vector.load %arg6[%c0_5, %c0_6] : memref<32x1xf32, #tpu.memory_space<vmem>>, vector<32x1xf32>
    %c0_7 = arith.constant 0 : index
    %c0_8 = arith.constant 0 : index
    %6 = vector.load %arg4[%c0_7, %c0_8] : memref<32x32xf32, #tpu.memory_space<vmem>>, vector<32x32xf32>
    %c0_9 = arith.constant 0 : index
    %c0_10 = arith.constant 0 : index
    %7 = memref.load %arg7[%c0_9, %c0_10] : memref<1x1xf32, #tpu.memory_space<smem>>
    %c0_i32 = arith.constant 0 : i32
    %c128_i32 = arith.constant 128 : i32
    %8 = arith.muli %c0_i32, %c128_i32 : i32
    %9 = tpu.assume_multiple %8, 128 : i32
    %c0_11 = arith.constant 0 : index
    %10 = arith.index_cast %9 : i32 to index
    %11 = vector.load %arg1[%c0_11, %10] : memref<2x128xf32, #tpu.memory_space<vmem>>, vector<2x128xf32>
    %12 = vector.extract_strided_slice %11 {offsets = [0, 0], sizes = [1, 128], strides = [1, 1]} : vector<2x128xf32> to vector<1x128xf32>
    %13 = vector.broadcast %1 : vector<32x1xf32> to vector<32x128xf32>
    %14 = vector.broadcast %12 : vector<1x128xf32> to vector<32x128xf32>
    %15 = arith.mulf %13, %14 : vector<32x128xf32>
    %16 = vector.extract_strided_slice %11 {offsets = [1, 0], sizes = [1, 128], strides = [1, 1]} : vector<2x128xf32> to vector<1x128xf32>
    %17 = vector.broadcast %2 : vector<32x1xf32> to vector<32x128xf32>
    %18 = vector.broadcast %16 : vector<1x128xf32> to vector<32x128xf32>
    %19 = arith.mulf %17, %18 : vector<32x128xf32>
    %20 = arith.addf %15, %19 : vector<32x128xf32>
    %21 = vector.broadcast %3 : vector<32x1xf32> to vector<32x128xf32>
    %22 = arith.addf %20, %21 : vector<32x128xf32>
    %cst = arith.constant 0.000000e+00 : f32
    %23 = vector.broadcast %cst : f32 to vector<32x128xf32>
    %24 = arith.maximumf %22, %23 : vector<32x128xf32>
    %cst_12 = arith.constant dense<0.000000e+00> : vector<32x128xf32>
    %25 = tpu.matmul %6, %24, %cst_12 {dimension_numbers = #tpu.dot_dimension_numbers<[1], [0], [0], [1], [0, 0, 1, 1], [], []>} : vector<32x32xf32>, vector<32x128xf32>, vector<32x128xf32> -> vector<32x128xf32>
    %26 = vector.broadcast %4 : vector<32x1xf32> to vector<32x128xf32>
    %27 = arith.addf %25, %26 : vector<32x128xf32>
    %cst_13 = arith.constant 0.000000e+00 : f32
    %28 = vector.broadcast %cst_13 : f32 to vector<32x128xf32>
    %29 = arith.maximumf %27, %28 : vector<32x128xf32>
    %30 = vector.broadcast %5 : vector<32x1xf32> to vector<32x128xf32>
    %31 = arith.mulf %30, %29 : vector<32x128xf32>
    %cst_14 = arith.constant dense<0.000000e+00> : vector<128xf32>
    %32 = vector.multi_reduction <add>, %31, %cst_14 [0] : vector<32x128xf32> to vector<128xf32>
    %33 = vector.shape_cast %32 : vector<128xf32> to vector<1x128xf32>
    %34 = vector.broadcast %7 : f32 to vector<1x128xf32>
    %35 = arith.addf %33, %34 : vector<1x128xf32>
    %36 = arith.negf %35 : vector<1x128xf32>
    %37 = math.exp %36 : vector<1x128xf32>
    %cst_15 = arith.constant 1.000000e+00 : f32
    %38 = vector.broadcast %cst_15 : f32 to vector<1x128xf32>
    %39 = arith.addf %38, %37 : vector<1x128xf32>
    %40 = arith.divf %38, %39 : vector<1x128xf32>
    %c0_16 = arith.constant 0 : index
    %41 = arith.index_cast %9 : i32 to index
    %42 = vector.load %arg8[%c0_16, %41] : memref<1x128xf32, #tpu.memory_space<vmem>>, vector<1x128xf32>
    tpu.vector_store %arg8[%c0_16, %41], %40 {strides = array<i32>} : memref<1x128xf32, #tpu.memory_space<vmem>>, vector<1x128xf32>,
    %c1_i32 = arith.constant 1 : i32
    return
  }
  func.func @transform_0(%arg0: i32) -> (i32, i32) {
    %c0_i32 = arith.constant 0 : i32
    %c0_i32_0 = arith.constant 0 : i32
    return %c0_i32, %arg0 : i32, i32
  }
  func.func @transform_1(%arg0: i32) -> (i32, i32) {
    %c0_i32 = arith.constant 0 : i32
    %c0_i32_0 = arith.constant 0 : i32
    %c0_i32_1 = arith.constant 0 : i32
    return %c0_i32, %c0_i32_0 : i32, i32
  }
  func.func @transform_2(%arg0: i32) -> (i32, i32) {
    %c0_i32 = arith.constant 0 : i32
    %c0_i32_0 = arith.constant 0 : i32
    %c0_i32_1 = arith.constant 0 : i32
    return %c0_i32, %c0_i32_0 : i32, i32
  }
  func.func @transform_3(%arg0: i32) -> (i32, i32) {
    %c0_i32 = arith.constant 0 : i32
    %c0_i32_0 = arith.constant 0 : i32
    %c0_i32_1 = arith.constant 0 : i32
    return %c0_i32, %c0_i32_0 : i32, i32
  }
  func.func @transform_4(%arg0: i32) -> (i32, i32) {
    %c0_i32 = arith.constant 0 : i32
    %c0_i32_0 = arith.constant 0 : i32
    %c0_i32_1 = arith.constant 0 : i32
    return %c0_i32, %c0_i32_0 : i32, i32
  }
  func.func @transform_5(%arg0: i32) -> (i32, i32) {
    %c0_i32 = arith.constant 0 : i32
    %c0_i32_0 = arith.constant 0 : i32
    %c0_i32_1 = arith.constant 0 : i32
    return %c0_i32, %c0_i32_0 : i32, i32
  }
  func.func @transform_6(%arg0: i32) -> (i32, i32) {
    %c0_i32 = arith.constant 0 : i32
    %c0_i32_0 = arith.constant 0 : i32
    %c0_i32_1 = arith.constant 0 : i32
    return %c0_i32, %c0_i32_0 : i32, i32
  }
  func.func @transform_7(%arg0: i32) -> (i32, i32) {
    %c0_i32 = arith.constant 0 : i32
    %c0_i32_0 = arith.constant 0 : i32
    return %c0_i32, %arg0 : i32, i32
  }
}

</mosaic_0001>

<llo_original>
// kernel: tpu_custom_call.1
$region0: #{tpu_custom_call.1}
  #allocation0 [shape = 'u32[]', space=smem, size = 0x4, offset = 0x4, fixed_abs, tag = 'smem constant byte address 0x4 - core index']
  #allocation1 [shape = 'u32[144,128]{1,0:T(1,128)}', space=vmem, size = 0x12000, scoped, tag = 'internal scratch']
  #allocation2 [shape = 'f32[1,1]{1,0:T(1,128)S(6)}', space=smem, size = 0x200, scoped, tag = 'scoped memory for tpu_custom_call.1']
  %s0 = inlined_call_operand.vmem [shape: f32[2,128], index: 0, kind: input, shape index: {}]
  %s1 = inlined_call_operand.vmem [shape: f32[32,2], index: 1, kind: input, shape index: {}]
  %s2 = inlined_call_operand.vmem [shape: f32[32,1], index: 2, kind: input, shape index: {}]
  %s3 = inlined_call_operand.vmem [shape: f32[32,32], index: 3, kind: input, shape index: {}]
  %s4 = inlined_call_operand.vmem [shape: f32[32,1], index: 4, kind: input, shape index: {}]
  %s5 = inlined_call_operand.vmem [shape: f32[32,1], index: 5, kind: input, shape index: {}]
  %s6 = inlined_call_operand.<no memory space> [shape: f32[1,1], index: 6, kind: input, shape index: {}]
  %s7 = inlined_call_operand.hbm [shape: f32[1,128], index: 7, kind: output, shape index: {}]
  %s8 = sld [smem:[#allocation0]]
  $region38: #{tpu_custom_call.1} parent=0
    _
  %s10 = ssub.s32 1, %s8
  %s11 = scalar_select 0, %s10, %s8
  %12 = sst [smem:[#allocation2]] %s6
  $region1: #{tpu_custom_call.1} parent=0
    #allocation3 [shape = 'u8[512]{0}', space=vmem, size = 0x400, scoped, tag = 'output window, operand 0, single buffered']
    #allocation4 [shape = 's32[1]{0}', space=sflag, size = 0x4, scoped, tag = 'scoped memory for tpu_custom_call.1']
    %13 = vsyncpa [#allocation4], 0
    // Predicated region
    $region2: #{tpu_custom_call.1} parent=1 // pred_check
      _
    $region3: #{tpu_custom_call.1} parent=1 // pred_check_branch
      %15 = sbr.rel (0) target = $region5
    $region4: #{tpu_custom_call.1} parent=1 // pred_region
      _
    $region5: #{tpu_custom_call.1} parent=1 // pred_fallthru
      _
    // Predicated region
    $region6: #{tpu_custom_call.1} parent=1 // pred_check
      _
    $region7: #{tpu_custom_call.1} parent=1 // pred_check_branch
      %17 = sbr.rel (0) target = $region9
    $region8: #{tpu_custom_call.1} parent=1 // pred_region
      _
    $region9: #{tpu_custom_call.1} parent=1 // pred_fallthru
      _
    // Predicated region
    $region10: #{tpu_custom_call.1} parent=1 // pred_check
      _
    $region11: #{tpu_custom_call.1} parent=1 // pred_check_branch
      %19 = sbr.rel (0) target = $region13
    $region12: #{tpu_custom_call.1} parent=1 // pred_region
      _
    $region13: #{tpu_custom_call.1} parent=1 // pred_fallthru
      _
    // Predicated region
    $region14: #{tpu_custom_call.1} parent=1 // pred_check
      _
    $region15: #{tpu_custom_call.1} parent=1 // pred_check_branch
      %21 = sbr.rel (0) target = $region17
    $region16: #{tpu_custom_call.1} parent=1 // pred_region
      _
    $region17: #{tpu_custom_call.1} parent=1 // pred_fallthru
      _
    // Predicated region
    $region18: #{tpu_custom_call.1} parent=1 // pred_check
      _
    $region19: #{tpu_custom_call.1} parent=1 // pred_check_branch
      %23 = sbr.rel (0) target = $region21
    $region20: #{tpu_custom_call.1} parent=1 // pred_region
      _
    $region21: #{tpu_custom_call.1} parent=1 // pred_fallthru
      _
    // Predicated region
    $region22: #{tpu_custom_call.1} parent=1 // pred_check
      _
    $region23: #{tpu_custom_call.1} parent=1 // pred_check_branch
      %25 = sbr.rel (0) target = $region25
    $region24: #{tpu_custom_call.1} parent=1 // pred_region
      _
    $region25: #{tpu_custom_call.1} parent=1 // pred_fallthru
      _
    // Predicated region
    $region26: #{tpu_custom_call.1} parent=1 // pred_check
      _
    $region27: #{tpu_custom_call.1} parent=1 // pred_check_branch
      %27 = sbr.rel (0) target = $region29
    $region28: #{tpu_custom_call.1} parent=1 // pred_region
      _
    $region29: #{tpu_custom_call.1} parent=1 // pred_fallthru
      _
    %v28 = vld [vmem:[%s1] sm:$0xff]
    %v29 = vld [vmem:[%s1 + $0x8] sm:$0xff]
    %v30 = vld [vmem:[%s1 + $0x10] sm:$0xff]
    %v31 = vld [vmem:[%s1 + $0x18] sm:$0xff]
    %v32 = vld [vmem:[%s2] sm:$0xff]
    %v33 = vld [vmem:[%s2 + $0x8] sm:$0xff]
    %v34 = vld [vmem:[%s2 + $0x10] sm:$0xff]
    %v35 = vld [vmem:[%s2 + $0x18] sm:$0xff]
    %v36 = vld [vmem:[%s4] sm:$0xff]
    %v37 = vld [vmem:[%s4 + $0x8] sm:$0xff]
    %v38 = vld [vmem:[%s4 + $0x10] sm:$0xff]
    %v39 = vld [vmem:[%s4 + $0x18] sm:$0xff]
    %v40 = vld [vmem:[%s5] sm:$0xff]
    %v41 = vld [vmem:[%s5 + $0x8] sm:$0xff]
    %v42 = vld [vmem:[%s5 + $0x10] sm:$0xff]
    %v43 = vld [vmem:[%s5 + $0x18] sm:$0xff]
    %v44 = vld [vmem:[%s3] sm:$0xff]
    %v45 = vld [vmem:[%s3 + $0x8] sm:$0xff]
    %v46 = vld [vmem:[%s3 + $0x10] sm:$0xff]
    %v47 = vld [vmem:[%s3 + $0x18] sm:$0xff]
    %s48 = sld [smem:[#allocation2]]
    %v49 = vld [vmem:[%s0] sm:$0x3]
    %51 = vset.pattern.permute.xlu0 0
    %52 = vperm.xlu0 %51, %v28
    %v53 = vpop.permute.xlu0 %52
    %56 = vset.pattern.permute.xlu0 0
    %57 = vperm.xlu0 %56, %v29
    %v58 = vpop.permute.xlu0 %57
    %61 = vset.pattern.permute.xlu0 0
    %62 = vperm.xlu0 %61, %v30
    %v63 = vpop.permute.xlu0 %62
    %66 = vset.pattern.permute.xlu0 0
    %67 = vperm.xlu0 %66, %v31
    %v68 = vpop.permute.xlu0 %67
    %v70 = vlaneseq
    %v71 = vshrl.u32 %v70, 7
    %v72 = vsub.s32 0, %v71
    %v73 = vrot.slane %v49, %v72
    %v74 = vmul.f32 %v53, %v73
    %v75 = vmul.f32 %v58, %v73
    %v76 = vmul.f32 %v63, %v73
    %v77 = vmul.f32 %v68, %v73
    %78 = vset.pattern.permute.xlu0 1
    %79 = vperm.xlu0 %78, %v28
    %v80 = vpop.permute.xlu0 %79
    %82 = vset.pattern.permute.xlu0 1
    %83 = vperm.xlu0 %82, %v29
    %v84 = vpop.permute.xlu0 %83
    %86 = vset.pattern.permute.xlu0 1
    %87 = vperm.xlu0 %86, %v30
    %v88 = vpop.permute.xlu0 %87
    %90 = vset.pattern.permute.xlu0 1
    %91 = vperm.xlu0 %90, %v31
    %v92 = vpop.permute.xlu0 %91
    %v94 = vlaneseq
    %v95 = vshrl.u32 %v94, 7
    %v96 = vsub.s32 1, %v95
    %v97 = vrot.slane %v49, %v96
    %v98 = vmul.f32 %v80, %v97
    %v99 = vmul.f32 %v84, %v97
    %v100 = vmul.f32 %v88, %v97
    %v101 = vmul.f32 %v92, %v97
    %v102 = vadd.f32 %v74, %v98
    %v103 = vadd.f32 %v75, %v99
    %v104 = vadd.f32 %v76, %v100
    %v105 = vadd.f32 %v77, %v101
    %107 = vset.pattern.permute.xlu0 0
    %108 = vperm.xlu0 %107, %v32
    %v109 = vpop.permute.xlu0 %108
    %112 = vset.pattern.permute.xlu0 0
    %113 = vperm.xlu0 %112, %v33
    %v114 = vpop.permute.xlu0 %113
    %117 = vset.pattern.permute.xlu0 0
    %118 = vperm.xlu0 %117, %v34
    %v119 = vpop.permute.xlu0 %118
    %122 = vset.pattern.permute.xlu0 0
    %123 = vperm.xlu0 %122, %v35
    %v124 = vpop.permute.xlu0 %123
    %v126 = vadd.f32 %v102, %v109
    %v127 = vadd.f32 %v103, %v114
    %v128 = vadd.f32 %v104, %v119
    %v129 = vadd.f32 %v105, %v124
    %v130 = vmax.f32 %v126, 0.0
    %v131 = vmax.f32 %v127, 0.0
    %v132 = vmax.f32 %v128, 0.0
    %v133 = vmax.f32 %v129, 0.0
    %135 = vset.pattern.permute.xlu0 0
    %136 = vperm.xlu0 %135, %v36
    %v137 = vpop.permute.xlu0 %136
    %140 = vset.pattern.permute.xlu0 0
    %141 = vperm.xlu0 %140, %v37
    %v142 = vpop.permute.xlu0 %141
    %145 = vset.pattern.permute.xlu0 0
    %146 = vperm.xlu0 %145, %v38
    %v147 = vpop.permute.xlu0 %146
    %150 = vset.pattern.permute.xlu0 0
    %151 = vperm.xlu0 %150, %v39
    %v152 = vpop.permute.xlu0 %151
    %vm154 = vcmask 261120
    %v156 = vsel %vm154, %v44, 0
    %v159 = vsel %vm154, %v45, 0
    %v162 = vsel %vm154, %v46, 0
    %v165 = vsel %vm154, %v47, 0
    %167 = vmatprep.subr.mxu0 0.0
    %168 = vmatpush1.msra.mxu0 0.0
    %169 = vmatprep.subr.mxu0 0.0
    %170 = vmatpush1.msra.mxu0 0.0
    %171 = vmatprep.subr.mxu0 0.0
    %172 = vmatpush1.msra.mxu0 0.0
    %173 = vmatprep.subr.mxu0 0.0
    %174 = vmatpush1.msra.mxu0 0.0
    %175 = vmatprep.subr.mxu0 0.0
    %176 = vmatpush1.msra.mxu0 0.0
    %177 = vmatprep.subr.mxu0 0.0
    %178 = vmatpush1.msra.mxu0 0.0
    %179 = vmatprep.subr.mxu0 0.0
    %180 = vmatpush1.msra.mxu0 0.0
    %181 = vmatprep.subr.mxu0 0.0
    %182 = vmatpush1.msra.mxu0 0.0
    %183 = vmatprep.subr.mxu0 0.0
    %184 = vmatpush1.msra.mxu0 0.0
    %185 = vmatprep.subr.mxu0 0.0
    %186 = vmatpush1.msra.mxu0 0.0
    %187 = vmatprep.subr.mxu0 0.0
    %188 = vmatpush1.msra.mxu0 0.0
    %189 = vmatprep.subr.mxu0 0.0
    %190 = vmatpush1.msra.mxu0 0.0
    %191 = vmatprep.subr.mxu0 0.0
    %192 = vmatpush1.msra.mxu0 %v133
    %193 = vmatprep.subr.mxu0 0.0
    %194 = vmatpush1.msra.mxu0 %v132
    %195 = vmatprep.subr.mxu0 0.0
    %196 = vmatpush1.msra.mxu0 %v131
    %197 = vmatprep.subr.mxu0 0.0
    %198 = vmatpush1.msra.mxu0 %v130
    %199 = vmatprep.subr.mxu0 0.0
    %200 = vmatpush2.msra.mxu0 0.0
    %201 = vmatprep.subr.mxu0 0.0
    %202 = vmatpush2.msra.mxu0 0.0
    %203 = vmatprep.subr.mxu0 0.0
    %204 = vmatpush2.msra.mxu0 0.0
    %205 = vmatprep.subr.mxu0 0.0
    %206 = vmatpush2.msra.mxu0 0.0
    %207 = vmatprep.subr.mxu0 0.0
    %208 = vmatpush2.msra.mxu0 0.0
    %209 = vmatprep.subr.mxu0 0.0
    %210 = vmatpush2.msra.mxu0 0.0
    %211 = vmatprep.subr.mxu0 0.0
    %212 = vmatpush2.msra.mxu0 0.0
    %213 = vmatprep.subr.mxu0 0.0
    %214 = vmatpush2.msra.mxu0 0.0
    %215 = vmatprep.subr.mxu0 0.0
    %216 = vmatpush2.msra.mxu0 0.0
    %217 = vmatprep.subr.mxu0 0.0
    %218 = vmatpush2.msra.mxu0 0.0
    %219 = vmatprep.subr.mxu0 0.0
    %220 = vmatpush2.msra.mxu0 0.0
    %221 = vmatprep.subr.mxu0 0.0
    %222 = vmatpush2.msra.mxu0 0.0
    %223 = vmatprep.subr.mxu0 0.0
    %224 = vmatpush2.msra.mxu0 0.0
    %225 = vmatprep.subr.mxu0 0.0
    %226 = vmatpush2.msra.mxu0 0.0
    %227 = vmatprep.subr.mxu0 0.0
    %228 = vmatpush2.msra.mxu0 0.0
    %229 = vmatprep.subr.mxu0 0.0
    %230 = vmatpush2.msra.mxu0 0.0
    %231 = vmatprep.mubr.f32.mxu0 0.0
    %232 = vmatmul.mubr.f32.gmra.mxu0 %v156
    %v233 = vpop.f32.mrf.mxu0
    %v234 = vadd.f32 %v137, %v233
    %v235 = vpop.f32.mrf.mxu0
    %236 = vmatprep.mubr.f32.mxu0 0.0
    %237 = vmatmul.mubr.f32.gmra.mxu0 %v159
    %v238 = vpop.f32.mrf.mxu0
    %v239 = vadd.f32 %v142, %v238
    %v240 = vpop.f32.mrf.mxu0
    %241 = vmatprep.mubr.f32.mxu0 0.0
    %242 = vmatmul.mubr.f32.gmra.mxu0 %v162
    %v243 = vpop.f32.mrf.mxu0
    %v244 = vadd.f32 %v147, %v243
    %v245 = vpop.f32.mrf.mxu0
    %246 = vmatprep.mubr.f32.mxu0 0.0
    %247 = vmatmul.mubr.f32.gmra.mxu0 %v165
    %v248 = vpop.f32.mrf.mxu0
    %v249 = vadd.f32 %v152, %v248
    %v250 = vpop.f32.mrf.mxu0
    %251 = vdwg.mxu0
    %v252 = vmax.f32 %v234, 0.0
    %v253 = vmax.f32 %v239, 0.0
    %v254 = vmax.f32 %v244, 0.0
    %v255 = vmax.f32 %v249, 0.0
    %257 = vset.pattern.permute.xlu0 0
    %258 = vperm.xlu0 %257, %v40
    %v259 = vpop.permute.xlu0 %258
    %262 = vset.pattern.permute.xlu0 0
    %263 = vperm.xlu0 %262, %v41
    %v264 = vpop.permute.xlu0 %263
    %267 = vset.pattern.permute.xlu0 0
    %268 = vperm.xlu0 %267, %v42
    %v269 = vpop.permute.xlu0 %268
    %272 = vset.pattern.permute.xlu0 0
    %273 = vperm.xlu0 %272, %v43
    %v274 = vpop.permute.xlu0 %273
    %v276 = vmul.f32 %v259, %v252
    %v277 = vmul.f32 %v264, %v253
    %v278 = vmul.f32 %v269, %v254
    %v279 = vmul.f32 %v274, %v255
    %v280 = vadd.f32 %v276, %v277
    %v281 = vadd.f32 %v280, %v278
    %v282 = vadd.f32 %v281, %v279
    %v283 = vrot.slane %v282, 4
    %v284 = vadd.f32 %v282, %v283
    %v285 = vrot.slane %v284, 2
    %v286 = vadd.f32 %v284, %v285
    %v287 = vrot.slane %v286, 1
    %v288 = vadd.f32 %v286, %v287
    %v289 = vstv %s48
    %v290 = vadd.f32 %v288, %v289
    %v291 = vxor.u32 %v290, 2147483648
    %v292 = vmul.f32 %v291, 1.442695
    %v293 = vpow.pop %v292
    %v294 = vadd.f32 %v293, 1.0
    %v295 = vrcp.pop %v294
    %v296 = vmul.f32 1.0, %v295
    %297 = vst [vmem:[#allocation3] sm:$0x1] %v296
    // Predicated region
    $region30: #{tpu_custom_call.1} parent=1 // pred_check
      _
    $region31: #{tpu_custom_call.1} parent=1 // pred_check_branch
      %299 = sbr.rel (0) target = $region33
    $region32: #{tpu_custom_call.1} parent=1 // pred_region
      %s301 = ssub.s32 16, 16
      %302 = vsyncadd [#allocation4], %s301
      %s304 = sshll.u32 [#allocation3], 4
      %s305 = int_to_ptr.vmem [resolvable:$true] %s304
      %307 = dma.vmem_to_hbm [thread:$0]  %s305, 16, %s7, [#allocation4]
    $region33: #{tpu_custom_call.1} parent=1 // pred_fallthru
      _
    // Predicated region
    $region34: #{tpu_custom_call.1} parent=1 // pred_check
      _
    $region35: #{tpu_custom_call.1} parent=1 // pred_check_branch
      %309 = sbr.rel (0) target = $region37
    $region36: #{tpu_custom_call.1} parent=1 // pred_region
      %310 = dma.done [#allocation4], 16
    $region37: #{tpu_custom_call.1} parent=1 // pred_fallthru
      _
    %311 = vsyncpa [#allocation4], 1

</llo_original>
